<compile_context>
chip_gen: v7x
topology: tpu7x:2x2x1
jax: 0.10.0
libtpu: 0.0.40
codegen_flags: <defaults>
</compile_context>

<pallas_src>
import functools

import jax
import jax.numpy as jnp
from jax import lax
from jax.experimental import pallas as pl
from jax.experimental.pallas import tpu as pltpu


# ----------------------------- host-side helpers -----------------------------

def _shift_mats(D, K):
    """S[k, d, t] = 1 if input position d feeds output position t through tap k."""
    pad = K // 2
    d = jnp.arange(D)[:, None]
    t = jnp.arange(D)[None, :]
    return jnp.stack([(d == t + k - pad).astype(jnp.float32) for k in range(K)])


def _group_mean_matrix(C, D, G):
    """[C*D, C*D] matrix so that y @ M gives per-lane group means (1/n folded in)."""
    F = C * D
    lane = jnp.arange(F)
    grp = (lane // D) // (C // G)
    same = (grp[:, None] == grp[None, :]).astype(jnp.float32)
    n = (C // G) * D
    return same / float(n)


def _pad_rows(n, row_block):
    """(padded_rows, rows_per_block): multiple of 8, >=2 grid steps when n > row_block."""
    if n <= row_block:
        nb = max(8, ((n + 7) // 8) * 8)
        return nb, nb
    g = -(-n // row_block)                    # number of grid steps (>= 2)
    nb = ((-(-n // g) + 7) // 8) * 8          # ceil(n / g) rounded up to 8
    return nb * g, nb


def _stack_vectors(b_ext, gamma, beta):
    """Stack [bias_ext; gamma(0-padded); beta(0-padded)] into one [3, 2F] operand."""
    Fx = b_ext.shape[0]
    F = gamma.shape[0]
    g = jnp.pad(gamma, (0, Fx - F))
    be = jnp.pad(beta, (0, Fx - F))
    return jnp.stack([b_ext, g, be], axis=0)


def _small_k_contract(x, w):
    """x:[N,D] @ w:[D,F]. D tiny -> unrolled VPU broadcast-FMAs (no MXU push)."""
    D = x.shape[1]
    if D > 16:  # fall back to the MXU for non-tiny contractions
        return jnp.dot(x.astype(w.dtype), w, preferred_element_type=jnp.float32)
    acc = x[:, 0:1] * w[0:1, :]
    for d in range(1, D):
        acc = acc + x[:, d:d + 1] * w[d:d + 1, :]
    return acc


# --------------------------------- kernels -----------------------------------

def _force_cnn_kernel(x_ref, a1_ref, v1_ref, m1_ref, a2_ref, v2_ref, m2_ref,
                      wp_ref, bp_ref, o_ref, *, eps):
    """Rows-at-once CNN force encoder: (conv+GN-mean fused) -> GN -> ReLU x2 -> proj."""
    x = x_ref[...]                                               # [nb, D] f32

    # conv1 (1->C1) AND its GroupNorm mean in one pass (VPU FMAs, D taps).
    v1 = v1_ref[...]
    h = _small_k_contract(x, a1_ref[...]) + v1[0:1, :]           # [nb, 2*F1]
    F1 = h.shape[1] // 2
    yc = h[:, :F1] - h[:, F1:]                                   # centered
    var = jnp.dot(yc * yc, m1_ref[...], preferred_element_type=jnp.float32)
    inv = lax.rsqrt(var + eps)
    h1 = jnp.maximum(yc * inv * v1[1:2, :F1] + v1[2:3, :F1], 0.0)  # [nb, F1]

    # conv2 (C1->C2) AND its GroupNorm mean: one MXU contraction (bf16-capable).
    v2 = v2_ref[...]
    h = (jnp.dot(h1.astype(a2_ref.dtype), a2_ref[...],
                 preferred_element_type=jnp.float32) + v2[0:1, :])  # [nb, 2*F2]
    F2 = h.shape[1] // 2
    yc = h[:, :F2] - h[:, F2:]
    var = jnp.dot(yc * yc, m2_ref[...], preferred_element_type=jnp.float32)
    inv = lax.rsqrt(var + eps)
    h2 = jnp.maximum(yc * inv * v2[1:2, :F2] + v2[2:3, :F2], 0.0)   # [nb, F2] == Flatten

    # projection Linear(C2*D -> hidden)
    o_ref[...] = (jnp.dot(h2.astype(wp_ref.dtype), wp_ref[...],
                          preferred_element_type=jnp.float32)
                  + bp_ref[...]).astype(o_ref.dtype)


def _force_linear_kernel(x_ref, w_ref, b_ref, o_ref):
    """'Linear' branch: force_projection(4 -> 512) via VPU broadcast-FMAs."""
    o_ref[...] = (_small_k_contract(x_ref[...], w_ref[...])
                  + b_ref[...]).astype(o_ref.dtype)


# -------------------------------- wrappers ------------------------------------

def force_encoder_cnn(x_btd, params, *, n_groups1=16, n_groups2=16, eps=1e-5,
                      row_block=1024, matmul_dtype=jnp.float32,
                      out_dtype=jnp.float32):
    """ForceEncoder forward (force_encoder='CNN', train=True): [B,T,D] -> [B,T,hidden]."""
    B, T, D = x_btd.shape
    w1, b1, g1, be1 = params["w1"], params["b1"], params["g1"], params["be1"]
    w2, b2, g2, be2 = params["w2"], params["b2"], params["g2"], params["be2"]
    wp, bp = params["wp"], params["bp"]
    C1, C2, K = w1.shape[0], w2.shape[0], w1.shape[2]
    F1, F2 = C1 * D, C2 * D
    H = wp.shape[0]

    # Fold conv taps + channels into single contraction matrices (host side).
    S = _shift_mats(D, K)                                             # [K, D, D]
    a1 = jnp.einsum("ck,kdt->dct", w1[:, 0, :], S).reshape(D, F1)     # [D, C1*D]
    a2 = jnp.einsum("ock,kdt->cdot", w2, S).reshape(F1, F2)           # [C1*D, C2*D]

    # GroupNorm aggregation matrices (1/n folded in), built once on the host.
    m1 = _group_mean_matrix(C1, D, n_groups1)                         # [F1, F1]
    m2 = _group_mean_matrix(C2, D, n_groups2)                         # [F2, F2]

    # Fold the GN *mean* path into the preceding contraction:
    # x @ [A | A@M] (+ [b | b@M]) yields conv output and its group mean at once.
    a1_ext = jnp.concatenate([a1, a1 @ m1], axis=1)                   # [D, 2*F1], f32 (VPU path)
    a2_ext = jnp.concatenate([a2, a2 @ m2], axis=1).astype(matmul_dtype)  # [F1, 2*F2]
    wp_t = wp.T.astype(matmul_dtype)                                  # [F2, H]

    b1f = jnp.repeat(b1, D)
    b2f = jnp.repeat(b2, D)
    b1_ext = jnp.concatenate([b1f, b1f @ m1])                         # [2*F1]
    b2_ext = jnp.concatenate([b2f, b2f @ m2])                         # [2*F2]
    v1 = _stack_vectors(b1_ext, jnp.repeat(g1, D), jnp.repeat(be1, D))  # [3, 2*F1]
    v2 = _stack_vectors(b2_ext, jnp.repeat(g2, D), jnp.repeat(be2, D))  # [3, 2*F2]
    bpf = bp[None, :]                                                 # [1, H]

    N = B * T
    n_pad, nb = _pad_rows(N, row_block)
    x_rows = x_btd.reshape(N, D).astype(jnp.float32)
    if n_pad != N:
        x_rows = jnp.pad(x_rows, ((0, n_pad - N), (0, 0)))

    kernel = functools.partial(_force_cnn_kernel, eps=eps)
    const = lambda i: (0, 0)

    out = pl.pallas_call(
        kernel,
        out_shape=jax.ShapeDtypeStruct((n_pad, H), out_dtype),
        grid_spec=pltpu.PrefetchScalarGridSpec(
            num_scalar_prefetch=0,
            grid=(n_pad // nb,),
            in_specs=[
                pl.BlockSpec((nb, D), lambda i: (i, 0)),        # x rows
                pl.BlockSpec((D, 2 * F1), const),               # [a1 | a1@M1]
                pl.BlockSpec((3, 2 * F1), const),               # [b1_ext; gamma1; beta1]
                pl.BlockSpec((F1, F1), const),                  # M1 (variance aggregation)
                pl.BlockSpec((F1, 2 * F2), const),              # [a2 | a2@M2]
                pl.BlockSpec((3, 2 * F2), const),               # [b2_ext; gamma2; beta2]
                pl.BlockSpec((F2, F2), const),                  # M2
                pl.BlockSpec((F2, H), const),                   # projection weight
                pl.BlockSpec((1, H), const),                    # projection bias
            ],
            out_specs=pl.BlockSpec((nb, H), lambda i: (i, 0)),
        ),
        compiler_params=pltpu.CompilerParams(
            dimension_semantics=("parallel",)),
    )(x_rows, a1_ext, v1, m1, a2_ext, v2, m2, wp_t, bpf)

    return out[:N].reshape(B, T, H)


def force_encoder_linear(x_btd, params, *, row_block=1024, out_dtype=jnp.float32):
    """ForceEncoder forward (force_encoder='Linear', train=True): [B,T,4] -> [B,T,512]."""
    B, T, D = x_btd.shape
    w = params["w_lin"].T.astype(jnp.float32)       # [D, 512] (D=4 -> VPU FMA path)
    b = params["b_lin"][None, :]                    # [1, 512]
    H = w.shape[1]

    N = B * T
    n_pad, nb = _pad_rows(N, row_block)
    x_rows = x_btd.reshape(N, D).astype(jnp.float32)
    if n_pad != N:
        x_rows = jnp.pad(x_rows, ((0, n_pad - N), (0, 0)))

    out = pl.pallas_call(
        _force_linear_kernel,
        out_shape=jax.ShapeDtypeStruct((n_pad, H), out_dtype),
        grid_spec=pltpu.PrefetchScalarGridSpec(
            num_scalar_prefetch=0,
            grid=(n_pad // nb,),
            in_specs=[
                pl.BlockSpec((nb, D), lambda i: (i, 0)),
                pl.BlockSpec((D, H), lambda i: (0, 0)),
                pl.BlockSpec((1, H), lambda i: (0, 0)),
            ],
            out_specs=pl.BlockSpec((nb, H), lambda i: (i, 0)),
        ),
        compiler_params=pltpu.CompilerParams(
            dimension_semantics=("parallel",)),
    )(x_rows, w, b)

    return out[:N].reshape(B, T, H)


# -------------------- plain-JAX references (PyTorch semantics) ----------------

def ref_force_encoder_cnn(x, p, *, G1=16, G2=16, eps=1e-5):
    B, T, D = x.shape
    xr = x.reshape(B * T, 1, D)

    def conv1d(xin, w, b):
        pad = w.shape[2] // 2
        L = xin.shape[2]
        xp = jnp.pad(xin, ((0, 0), (0, 0), (pad, pad)))
        out = jnp.zeros((xin.shape[0], w.shape[0], L), jnp.float32)
        for k in range(w.shape[2]):
            out = out + jnp.einsum("bcl,oc->bol", xp[:, :, k:k + L], w[:, :, k])
        return out + b[None, :, None]

    def gn(y, gamma, beta, G):
        N, C, L = y.shape
        yr = y.reshape(N, G, (C // G) * L)
        mean = yr.mean(axis=2, keepdims=True)
        var = yr.var(axis=2, keepdims=True)
        yn = ((yr - mean) / jnp.sqrt(var + eps)).reshape(N, C, L)
        return yn * gamma[None, :, None] + beta[None, :, None]

    h = jax.nn.relu(gn(conv1d(xr, p["w1"], p["b1"]), p["g1"], p["be1"], G1))
    h = jax.nn.relu(gn(conv1d(h, p["w2"], p["b2"]), p["g2"], p["be2"], G2))
    h = h.reshape(B * T, -1)
    out = h @ p["wp"].T + p["bp"]
    return out.reshape(B, T, -1)


def ref_force_encoder_linear(x, p):
    B, T, D = x.shape
    out = x.reshape(B * T, D) @ p["w_lin"].T + p["b_lin"]
    return out.reshape(B, T, -1)


# ----------------------------------- demo -------------------------------------

if __name__ == "__main__":
    # Shapes implied by the module: force_dim D=4, obs_horizon T=8,
    # CNN channels 32/64 (fixed by the module), hidden_dim=128 (lane-dense).
    B, T, D = 2, 8, 4
    C1, C2, K = 32, 64, 3
    G1, G2 = 16, 16
    H = 128

    key = jax.random.PRNGKey(0)
    ks = jax.random.split(key, 13)
    params = {
        "w1": 0.3 * jax.random.normal(ks[0], (C1, 1, K), jnp.float32),
        "b1": 0.1 * jax.random.normal(ks[1], (C1,), jnp.float32),
        "g1": 1.0 + 0.1 * jax.random.normal(ks[2], (C1,), jnp.float32),
        "be1": 0.1 * jax.random.normal(ks[3], (C1,), jnp.float32),
        "w2": 0.3 * jax.random.normal(ks[4], (C2, C1, K), jnp.float32),
        "b2": 0.1 * jax.random.normal(ks[5], (C2,), jnp.float32),
        "g2": 1.0 + 0.1 * jax.random.normal(ks[6], (C2,), jnp.float32),
        "be2": 0.1 * jax.random.normal(ks[7], (C2,), jnp.float32),
        "wp": 0.1 * jax.random.normal(ks[8], (H, C2 * D), jnp.float32),
        "bp": 0.1 * jax.random.normal(ks[9], (H,), jnp.float32),
        "w_lin": 0.3 * jax.random.normal(ks[10], (512, D), jnp.float32),
        "b_lin": 0.1 * jax.random.normal(ks[11], (512,), jnp.float32),
    }
    x = jax.random.normal(ks[12], (B, T, D), jnp.float32)

    # CNN branch, f32 matmuls (exact parity with the PyTorch reference)
    out_cnn = jax.block_until_ready(
        force_encoder_cnn(x, params, n_groups1=G1, n_groups2=G2))
    ref_cnn = ref_force_encoder_cnn(x, params, G1=G1, G2=G2)
    assert out_cnn.shape == (B, T, H)
    assert jnp.allclose(out_cnn, ref_cnn, atol=1e-3, rtol=1e-3), (
        f"CNN(f32) max abs diff {jnp.max(jnp.abs(out_cnn - ref_cnn))}")

    # CNN branch with bf16 MXU operands (activations are now actually cast);
    # GN stats + elementwise math stay f32, so only matmul rounding differs.
    out_bf16 = jax.block_until_ready(
        force_encoder_cnn(x, params, n_groups1=G1, n_groups2=G2,
                          matmul_dtype=jnp.bfloat16))
    assert jnp.allclose(out_bf16, ref_cnn, atol=0.2, rtol=0.1), (
        f"CNN(bf16) max abs diff {jnp.max(jnp.abs(out_bf16 - ref_cnn))}")

    # Linear branch
    out_lin = jax.block_until_ready(force_encoder_linear(x, params))
    ref_lin = ref_force_encoder_linear(x, params)
    assert out_lin.shape == (B, T, 512)
    assert jnp.allclose(out_lin, ref_lin, atol=1e-4, rtol=1e-4), (
        f"Linear max abs diff {jnp.max(jnp.abs(out_lin - ref_lin))}")

    # TODO(synk): the 'Transformer' (6-layer nn.TransformerEncoder) and 'MLP'
    # encoder branches of ForceEncoder are full sub-networks and are not
    # implemented as single Pallas kernels here.
    print("KERNEL_OK")
</pallas_src>

<mosaic_0001>
module attributes {stable_mosaic.version = 11 : i64} {
  func.func @_force_cnn_kernel(%arg0: i32, %arg1: memref<16x4xf32, #tpu.memory_space<vmem>>, %arg2: memref<4x256xf32, #tpu.memory_space<vmem>>, %arg3: memref<3x256xf32, #tpu.memory_space<vmem>>, %arg4: memref<128x128xf32, #tpu.memory_space<vmem>>, %arg5: memref<128x512xf32, #tpu.memory_space<vmem>>, %arg6: memref<3x512xf32, #tpu.memory_space<vmem>>, %arg7: memref<256x256xf32, #tpu.memory_space<vmem>>, %arg8: memref<256x128xf32, #tpu.memory_space<vmem>>, %arg9: memref<1x128xf32, #tpu.memory_space<vmem>>, %arg10: memref<16x128xf32, #tpu.memory_space<vmem>>) attributes {dimension_semantics = [#tpu.dimension_semantics<parallel>], iteration_bounds = array<i64: 1>, scalar_prefetch = 0 : i64, scratch_operands = 0 : i64, tpu.core_type = #tpu.core_type<tc>, window_params = [{transform_indices = @transform_0, window_bounds = array<i64: 16, 4>}, {pipeline_mode = #tpu.pipeline_mode<synchronous>, transform_indices = @transform_1, window_bounds = array<i64: 4, 256>}, {pipeline_mode = #tpu.pipeline_mode<synchronous>, transform_indices = @transform_2, window_bounds = array<i64: 3, 256>}, {pipeline_mode = #tpu.pipeline_mode<synchronous>, transform_indices = @transform_3, window_bounds = array<i64: 128, 128>}, {pipeline_mode = #tpu.pipeline_mode<synchronous>, transform_indices = @transform_4, window_bounds = array<i64: 128, 512>}, {pipeline_mode = #tpu.pipeline_mode<synchronous>, transform_indices = @transform_5, window_bounds = array<i64: 3, 512>}, {pipeline_mode = #tpu.pipeline_mode<synchronous>, transform_indices = @transform_6, window_bounds = array<i64: 256, 256>}, {pipeline_mode = #tpu.pipeline_mode<synchronous>, transform_indices = @transform_7, window_bounds = array<i64: 256, 128>}, {pipeline_mode = #tpu.pipeline_mode<synchronous>, transform_indices = @transform_8, window_bounds = array<i64: 1, 128>}, {transform_indices = @transform_9, window_bounds = array<i64: 16, 128>}]} {
    %c0 = arith.constant 0 : index
    %c0_0 = arith.constant 0 : index
    %0 = vector.load %arg1[%c0, %c0_0] : memref<16x4xf32, #tpu.memory_space<vmem>>, vector<16x4xf32>
    %c0_1 = arith.constant 0 : index
    %c0_2 = arith.constant 0 : index
    %1 = vector.load %arg3[%c0_1, %c0_2] : memref<3x256xf32, #tpu.memory_space<vmem>>, vector<3x256xf32>
    %c0_3 = arith.constant 0 : index
    %c0_4 = arith.constant 0 : index
    %2 = vector.load %arg2[%c0_3, %c0_4] : memref<4x256xf32, #tpu.memory_space<vmem>>, vector<4x256xf32>
    %3 = vector.extract_strided_slice %0 {offsets = [0, 0], sizes = [16, 1], strides = [1, 1]} : vector<16x4xf32> to vector<16x1xf32>
    %4 = vector.extract_strided_slice %2 {offsets = [0, 0], sizes = [1, 256], strides = [1, 1]} : vector<4x256xf32> to vector<1x256xf32>
    %5 = vector.broadcast %3 : vector<16x1xf32> to vector<16x256xf32>
    %6 = vector.broadcast %4 : vector<1x256xf32> to vector<16x256xf32>
    %7 = arith.mulf %5, %6 : vector<16x256xf32>
    %8 = vector.extract_strided_slice %0 {offsets = [0, 1], sizes = [16, 1], strides = [1, 1]} : vector<16x4xf32> to vector<16x1xf32>
    %9 = vector.extract_strided_slice %2 {offsets = [1, 0], sizes = [1, 256], strides = [1, 1]} : vector<4x256xf32> to vector<1x256xf32>
    %10 = vector.broadcast %8 : vector<16x1xf32> to vector<16x256xf32>
    %11 = vector.broadcast %9 : vector<1x256xf32> to vector<16x256xf32>
    %12 = arith.mulf %10, %11 : vector<16x256xf32>
    %13 = arith.addf %7, %12 : vector<16x256xf32>
    %14 = vector.extract_strided_slice %0 {offsets = [0, 2], sizes = [16, 1], strides = [1, 1]} : vector<16x4xf32> to vector<16x1xf32>
    %15 = vector.extract_strided_slice %2 {offsets = [2, 0], sizes = [1, 256], strides = [1, 1]} : vector<4x256xf32> to vector<1x256xf32>
    %16 = vector.broadcast %14 : vector<16x1xf32> to vector<16x256xf32>
    %17 = vector.broadcast %15 : vector<1x256xf32> to vector<16x256xf32>
    %18 = arith.mulf %16, %17 : vector<16x256xf32>
    %19 = arith.addf %13, %18 : vector<16x256xf32>
    %20 = vector.extract_strided_slice %0 {offsets = [0, 3], sizes = [16, 1], strides = [1, 1]} : vector<16x4xf32> to vector<16x1xf32>
    %21 = vector.extract_strided_slice %2 {offsets = [3, 0], sizes = [1, 256], strides = [1, 1]} : vector<4x256xf32> to vector<1x256xf32>
    %22 = vector.broadcast %20 : vector<16x1xf32> to vector<16x256xf32>
    %23 = vector.broadcast %21 : vector<1x256xf32> to vector<16x256xf32>
    %24 = arith.mulf %22, %23 : vector<16x256xf32>
    %25 = arith.addf %19, %24 : vector<16x256xf32>
    %26 = vector.extract_strided_slice %1 {offsets = [0, 0], sizes = [1, 256], strides = [1, 1]} : vector<3x256xf32> to vector<1x256xf32>
    %27 = vector.broadcast %26 : vector<1x256xf32> to vector<16x256xf32>
    %28 = arith.addf %25, %27 : vector<16x256xf32>
    %29 = vector.extract_strided_slice %28 {offsets = [0, 0], sizes = [16, 128], strides = [1, 1]} : vector<16x256xf32> to vector<16x128xf32>
    %30 = vector.extract_strided_slice %28 {offsets = [0, 128], sizes = [16, 128], strides = [1, 1]} : vector<16x256xf32> to vector<16x128xf32>
    %31 = arith.subf %29, %30 : vector<16x128xf32>
    %32 = arith.mulf %31, %31 : vector<16x128xf32>
    %c0_5 = arith.constant 0 : index
    %c0_6 = arith.constant 0 : index
    %33 = vector.load %arg4[%c0_5, %c0_6] : memref<128x128xf32, #tpu.memory_space<vmem>>, vector<128x128xf32>
    %cst = arith.constant dense<0.000000e+00> : vector<16x128xf32>
    %34 = tpu.matmul %32, %33, %cst {dimension_numbers = #tpu.dot_dimension_numbers<[1], [0], [0], [1], [0, 0, 1, 1], [], []>} : vector<16x128xf32>, vector<128x128xf32>, vector<16x128xf32> -> vector<16x128xf32>
    %cst_7 = arith.constant 9.99999974E-6 : f32
    %35 = vector.broadcast %cst_7 : f32 to vector<16x128xf32>
    %36 = arith.addf %34, %35 : vector<16x128xf32>
    %37 = math.rsqrt %36 : vector<16x128xf32>
    %38 = arith.mulf %31, %37 : vector<16x128xf32>
    %39 = vector.extract_strided_slice %1 {offsets = [1, 0], sizes = [1, 128], strides = [1, 1]} : vector<3x256xf32> to vector<1x128xf32>
    %40 = vector.broadcast %39 : vector<1x128xf32> to vector<16x128xf32>
    %41 = arith.mulf %38, %40 : vector<16x128xf32>
    %42 = vector.extract_strided_slice %1 {offsets = [2, 0], sizes = [1, 128], strides = [1, 1]} : vector<3x256xf32> to vector<1x128xf32>
    %43 = vector.broadcast %42 : vector<1x128xf32> to vector<16x128xf32>
    %44 = arith.addf %41, %43 : vector<16x128xf32>
    %cst_8 = arith.constant 0.000000e+00 : f32
    %45 = vector.broadcast %cst_8 : f32 to vector<16x128xf32>
    %46 = arith.maximumf %44, %45 : vector<16x128xf32>
    %c0_9 = arith.constant 0 : index
    %c0_10 = arith.constant 0 : index
    %47 = vector.load %arg6[%c0_9, %c0_10] : memref<3x512xf32, #tpu.memory_space<vmem>>, vector<3x512xf32>
    %c0_11 = arith.constant 0 : index
    %c0_12 = arith.constant 0 : index
    %48 = vector.load %arg5[%c0_11, %c0_12] : memref<128x512xf32, #tpu.memory_space<vmem>>, vector<128x512xf32>
    %cst_13 = arith.constant dense<0.000000e+00> : vector<16x512xf32>
    %49 = tpu.matmul %46, %48, %cst_13 {dimension_numbers = #tpu.dot_dimension_numbers<[1], [0], [0], [1], [0, 0, 1, 1], [], []>} : vector<16x128xf32>, vector<128x512xf32>, vector<16x512xf32> -> vector<16x512xf32>
    %50 = vector.extract_strided_slice %47 {offsets = [0, 0], sizes = [1, 512], strides = [1, 1]} : vector<3x512xf32> to vector<1x512xf32>
    %51 = vector.broadcast %50 : vector<1x512xf32> to vector<16x512xf32>
    %52 = arith.addf %49, %51 : vector<16x512xf32>
    %53 = vector.extract_strided_slice %52 {offsets = [0, 0], sizes = [16, 256], strides = [1, 1]} : vector<16x512xf32> to vector<16x256xf32>
    %54 = vector.extract_strided_slice %52 {offsets = [0, 256], sizes = [16, 256], strides = [1, 1]} : vector<16x512xf32> to vector<16x256xf32>
    %55 = arith.subf %53, %54 : vector<16x256xf32>
    %56 = arith.mulf %55, %55 : vector<16x256xf32>
    %c0_14 = arith.constant 0 : index
    %c0_15 = arith.constant 0 : index
    %57 = vector.load %arg7[%c0_14, %c0_15] : memref<256x256xf32, #tpu.memory_space<vmem>>, vector<256x256xf32>
    %cst_16 = arith.constant dense<0.000000e+00> : vector<16x256xf32>
    %58 = tpu.matmul %56, %57, %cst_16 {dimension_numbers = #tpu.dot_dimension_numbers<[1], [0], [0], [1], [0, 0, 1, 1], [], []>} : vector<16x256xf32>, vector<256x256xf32>, vector<16x256xf32> -> vector<16x256xf32>
    %cst_17 = arith.constant 9.99999974E-6 : f32
    %59 = vector.broadcast %cst_17 : f32 to vector<16x256xf32>
    %60 = arith.addf %58, %59 : vector<16x256xf32>
    %61 = math.rsqrt %60 : vector<16x256xf32>
    %62 = arith.mulf %55, %61 : vector<16x256xf32>
    %63 = vector.extract_strided_slice %47 {offsets = [1, 0], sizes = [1, 256], strides = [1, 1]} : vector<3x512xf32> to vector<1x256xf32>
    %64 = vector.broadcast %63 : vector<1x256xf32> to vector<16x256xf32>
    %65 = arith.mulf %62, %64 : vector<16x256xf32>
    %66 = vector.extract_strided_slice %47 {offsets = [2, 0], sizes = [1, 256], strides = [1, 1]} : vector<3x512xf32> to vector<1x256xf32>
    %67 = vector.broadcast %66 : vector<1x256xf32> to vector<16x256xf32>
    %68 = arith.addf %65, %67 : vector<16x256xf32>
    %cst_18 = arith.constant 0.000000e+00 : f32
    %69 = vector.broadcast %cst_18 : f32 to vector<16x256xf32>
    %70 = arith.maximumf %68, %69 : vector<16x256xf32>
    %c0_19 = arith.constant 0 : index
    %c0_20 = arith.constant 0 : index
    %71 = vector.load %arg8[%c0_19, %c0_20] : memref<256x128xf32, #tpu.memory_space<vmem>>, vector<256x128xf32>
    %cst_21 = arith.constant dense<0.000000e+00> : vector<16x128xf32>
    %72 = tpu.matmul %70, %71, %cst_21 {dimension_numbers = #tpu.dot_dimension_numbers<[1], [0], [0], [1], [0, 0, 1, 1], [], []>} : vector<16x256xf32>, vector<256x128xf32>, vector<16x128xf32> -> vector<16x128xf32>
    %c0_22 = arith.constant 0 : index
    %c0_23 = arith.constant 0 : index
    %73 = vector.load %arg9[%c0_22, %c0_23] : memref<1x128xf32, #tpu.memory_space<vmem>>, vector<1x128xf32>
    %74 = vector.broadcast %73 : vector<1x128xf32> to vector<16x128xf32>
    %75 = arith.addf %72, %74 : vector<16x128xf32>
    %c0_24 = arith.constant 0 : index
    %c0_25 = arith.constant 0 : index
    %76 = vector.load %arg10[%c0_24, %c0_25] : memref<16x128xf32, #tpu.memory_space<vmem>>, vector<16x128xf32>
    tpu.vector_store %arg10[%c0_24, %c0_25], %75 {strides = array<i32>} : memref<16x128xf32, #tpu.memory_space<vmem>>, vector<16x128xf32>,
    return
  }
  func.func @transform_0(%arg0: i32) -> (i32, i32) {
    %c0_i32 = arith.constant 0 : i32
    %c0_i32_0 = arith.constant 0 : i32
    return %arg0, %c0_i32 : i32, i32
  }
  func.func @transform_1(%arg0: i32) -> (i32, i32) {
    %c0_i32 = arith.constant 0 : i32
    %c0_i32_0 = arith.constant 0 : i32
    %c0_i32_1 = arith.constant 0 : i32
    return %c0_i32, %c0_i32_0 : i32, i32
  }
  func.func @transform_2(%arg0: i32) -> (i32, i32) {
    %c0_i32 = arith.constant 0 : i32
    %c0_i32_0 = arith.constant 0 : i32
    %c0_i32_1 = arith.constant 0 : i32
    return %c0_i32, %c0_i32_0 : i32, i32
  }
  func.func @transform_3(%arg0: i32) -> (i32, i32) {
    %c0_i32 = arith.constant 0 : i32
    %c0_i32_0 = arith.constant 0 : i32
    %c0_i32_1 = arith.constant 0 : i32
    return %c0_i32, %c0_i32_0 : i32, i32
  }
  func.func @transform_4(%arg0: i32) -> (i32, i32) {
    %c0_i32 = arith.constant 0 : i32
    %c0_i32_0 = arith.constant 0 : i32
    %c0_i32_1 = arith.constant 0 : i32
    return %c0_i32, %c0_i32_0 : i32, i32
  }
  func.func @transform_5(%arg0: i32) -> (i32, i32) {
    %c0_i32 = arith.constant 0 : i32
    %c0_i32_0 = arith.constant 0 : i32
    %c0_i32_1 = arith.constant 0 : i32
    return %c0_i32, %c0_i32_0 : i32, i32
  }
  func.func @transform_6(%arg0: i32) -> (i32, i32) {
    %c0_i32 = arith.constant 0 : i32
    %c0_i32_0 = arith.constant 0 : i32
    %c0_i32_1 = arith.constant 0 : i32
    return %c0_i32, %c0_i32_0 : i32, i32
  }
  func.func @transform_7(%arg0: i32) -> (i32, i32) {
    %c0_i32 = arith.constant 0 : i32
    %c0_i32_0 = arith.constant 0 : i32
    %c0_i32_1 = arith.constant 0 : i32
    return %c0_i32, %c0_i32_0 : i32, i32
  }
  func.func @transform_8(%arg0: i32) -> (i32, i32) {
    %c0_i32 = arith.constant 0 : i32
    %c0_i32_0 = arith.constant 0 : i32
    %c0_i32_1 = arith.constant 0 : i32
    return %c0_i32, %c0_i32_0 : i32, i32
  }
  func.func @transform_9(%arg0: i32) -> (i32, i32) {
    %c0_i32 = arith.constant 0 : i32
    %c0_i32_0 = arith.constant 0 : i32
    return %arg0, %c0_i32 : i32, i32
  }
}

</mosaic_0001>

<llo_original>
// kernel: tpu_custom_call.1
$region0: #{tpu_custom_call.1}
  #allocation0 [shape = 'u32[]', space=smem, size = 0x4, offset = 0x4, fixed_abs, tag = 'smem constant byte address 0x4 - core index']
  #allocation1 [shape = 'u32[144,128]{1,0:T(1,128)}', space=vmem, size = 0x12000, scoped, tag = 'internal scratch']
  %s0 = inlined_call_operand.vmem [shape: f32[16,4], index: 0, kind: input, shape index: {}]
  %s1 = inlined_call_operand.vmem [shape: f32[4,256], index: 1, kind: input, shape index: {}]
  %s2 = inlined_call_operand.hbm [shape: f32[3,256], index: 2, kind: input, shape index: {}]
  %s3 = inlined_call_operand.hbm [shape: f32[128,128], index: 3, kind: input, shape index: {}]
  %s4 = inlined_call_operand.hbm [shape: f32[128,512], index: 4, kind: input, shape index: {}]
  %s5 = inlined_call_operand.vmem [shape: f32[3,512], index: 5, kind: input, shape index: {}]
  %s6 = inlined_call_operand.hbm [shape: f32[256,256], index: 6, kind: input, shape index: {}]
  %s7 = inlined_call_operand.hbm [shape: f32[256,128], index: 7, kind: input, shape index: {}]
  %s8 = inlined_call_operand.vmem [shape: f32[1,128], index: 8, kind: input, shape index: {}]
  %s9 = inlined_call_operand.hbm [shape: f32[16,128], index: 9, kind: output, shape index: {}]
  %s10 = sld [smem:[#allocation0]]
  $region66: #{tpu_custom_call.1} parent=0
    _
  %s12 = ssub.s32 1, %s10
  %s13 = scalar_select 0, %s12, %s10
  $region1: #{tpu_custom_call.1} parent=0
    #allocation2 [shape = 'u8[4096]{0}', space=vmem, size = 0x1000, scoped, tag = 'input window, operand 2, single buffered']
    #allocation3 [shape = 's32[1]{0}', space=sflag, size = 0x4, scoped, tag = 'scoped memory for tpu_custom_call.1']
    #allocation4 [shape = 's32[1]{0}', space=sflag, size = 0x4, scoped, tag = 'scoped memory for tpu_custom_call.1']
    #allocation5 [shape = 'u8[65536]{0}', space=vmem, size = 0x10000, scoped, tag = 'input window, operand 3, single buffered']
    #allocation6 [shape = 's32[1]{0}', space=sflag, size = 0x4, scoped, tag = 'scoped memory for tpu_custom_call.1']
    #allocation7 [shape = 'u8[262144]{0}', space=vmem, size = 0x40000, scoped, tag = 'input window, operand 4, single buffered']
    #allocation8 [shape = 'u8[262144]{0}', space=vmem, size = 0x40000, scoped, tag = 'input window, operand 6, single buffered']
    #allocation9 [shape = 's32[1]{0}', space=sflag, size = 0x4, scoped, tag = 'scoped memory for tpu_custom_call.1']
    #allocation10 [shape = 'u8[131072]{0}', space=vmem, size = 0x20000, scoped, tag = 'input window, operand 7, single buffered']
    #allocation11 [shape = 'u8[8192]{0}', space=vmem, size = 0x2000, scoped, tag = 'output window, operand 0, single buffered']
    %14 = vsyncpa [#allocation3], 0
    %15 = vsyncpa [#allocation6], 0
    %16 = vsyncpa [#allocation9], 0
    %17 = vsyncpa [#allocation4], 0
    // Predicated region
    $region2: #{tpu_custom_call.1} parent=1 // pred_check
      _
    $region3: #{tpu_custom_call.1} parent=1 // pred_check_branch
      %19 = sbr.rel (0) target = $region5
    $region4: #{tpu_custom_call.1} parent=1 // pred_region
      _
    $region5: #{tpu_custom_call.1} parent=1 // pred_fallthru
      _
    // Predicated region
    $region6: #{tpu_custom_call.1} parent=1 // pred_check
      _
    $region7: #{tpu_custom_call.1} parent=1 // pred_check_branch
      %21 = sbr.rel (0) target = $region9
    $region8: #{tpu_custom_call.1} parent=1 // pred_region
      _
    $region9: #{tpu_custom_call.1} parent=1 // pred_fallthru
      _
    // Predicated region
    $region10: #{tpu_custom_call.1} parent=1 // pred_check
      _
    $region11: #{tpu_custom_call.1} parent=1 // pred_check_branch
      %23 = sbr.rel (0) target = $region13
    $region12: #{tpu_custom_call.1} parent=1 // pred_region
      %s25 = ssub.s32 128, 128
      %26 = vsyncadd [#allocation3], %s25
      %s28 = sshll.u32 [#allocation2], 4
      %s29 = int_to_ptr.vmem [resolvable:$true] %s28
      %31 = dma.hbm_to_vmem [thread:$0]  %s2, 128, %s29, [#allocation3]
    $region13: #{tpu_custom_call.1} parent=1 // pred_fallthru
      _
    // Predicated region
    $region14: #{tpu_custom_call.1} parent=1 // pred_check
      _
    $region15: #{tpu_custom_call.1} parent=1 // pred_check_branch
      %33 = sbr.rel (0) target = $region17
    $region16: #{tpu_custom_call.1} parent=1 // pred_region
      %s35 = ssub.s32 2048, 2048
      %36 = vsyncadd [#allocation6], %s35
      %s37 = sshll.u32 [#allocation5], 4
      %s38 = int_to_ptr.vmem [resolvable:$true] %s37
      %43 = dma.hbm_to_vmem [thread:$0]  %s3, 2048, %s38, [#allocation6], 128, 128, 8
    $region17: #{tpu_custom_call.1} parent=1 // pred_fallthru
      _
    // Predicated region
    $region18: #{tpu_custom_call.1} parent=1 // pred_check
      _
    $region19: #{tpu_custom_call.1} parent=1 // pred_check_branch
      %45 = sbr.rel (0) target = $region21
    $region20: #{tpu_custom_call.1} parent=1 // pred_region
      %s47 = ssub.s32 8192, 8192
      %48 = vsyncadd [#allocation6], %s47
      %s49 = sshll.u32 [#allocation7], 4
      %s50 = int_to_ptr.vmem [resolvable:$true] %s49
      %55 = dma.hbm_to_vmem [thread:$0]  %s4, 8192, %s50, [#allocation6], 512, 512, 32
    $region21: #{tpu_custom_call.1} parent=1 // pred_fallthru
      _
    // Predicated region
    $region22: #{tpu_custom_call.1} parent=1 // pred_check
      _
    $region23: #{tpu_custom_call.1} parent=1 // pred_check_branch
      %57 = sbr.rel (0) target = $region25
    $region24: #{tpu_custom_call.1} parent=1 // pred_region
      _
    $region25: #{tpu_custom_call.1} parent=1 // pred_fallthru
      _
    // Predicated region
    $region26: #{tpu_custom_call.1} parent=1 // pred_check
      _
    $region27: #{tpu_custom_call.1} parent=1 // pred_check_branch
      %59 = sbr.rel (0) target = $region29
    $region28: #{tpu_custom_call.1} parent=1 // pred_region
      %s61 = ssub.s32 8192, 8192
      %62 = vsyncadd [#allocation9], %s61
      %s63 = sshll.u32 [#allocation8], 4
      %s64 = int_to_ptr.vmem [resolvable:$true] %s63
      %69 = dma.hbm_to_vmem [thread:$0]  %s6, 8192, %s64, [#allocation9], 256, 256, 16
    $region29: #{tpu_custom_call.1} parent=1 // pred_fallthru
      _
    // Predicated region
    $region30: #{tpu_custom_call.1} parent=1 // pred_check
      _
    $region31: #{tpu_custom_call.1} parent=1 // pred_check_branch
      %71 = sbr.rel (0) target = $region33
    $region32: #{tpu_custom_call.1} parent=1 // pred_region
      %s73 = ssub.s32 4096, 4096
      %74 = vsyncadd [#allocation9], %s73
      %s75 = sshll.u32 [#allocation10], 4
      %s76 = int_to_ptr.vmem [resolvable:$true] %s75
      %81 = dma.hbm_to_vmem [thread:$0]  %s7, 4096, %s76, [#allocation9], 128, 128, 8
    $region33: #{tpu_custom_call.1} parent=1 // pred_fallthru
      _
    // Predicated region
    $region34: #{tpu_custom_call.1} parent=1 // pred_check
      _
    $region35: #{tpu_custom_call.1} parent=1 // pred_check_branch
      %83 = sbr.rel (0) target = $region37
    $region36: #{tpu_custom_call.1} parent=1 // pred_region
      _
    $region37: #{tpu_custom_call.1} parent=1 // pred_fallthru
      _
    // Predicated region
    $region38: #{tpu_custom_call.1} parent=1 // pred_check
      _
    $region39: #{tpu_custom_call.1} parent=1 // pred_check_branch
      %85 = sbr.rel (0) target = $region41
    $region40: #{tpu_custom_call.1} parent=1 // pred_region
      %86 = dma.done [#allocation3], 128
    $region41: #{tpu_custom_call.1} parent=1 // pred_fallthru
      _
    // Predicated region
    $region42: #{tpu_custom_call.1} parent=1 // pred_check
      _
    $region43: #{tpu_custom_call.1} parent=1 // pred_check_branch
      %88 = sbr.rel (0) target = $region45
    $region44: #{tpu_custom_call.1} parent=1 // pred_region
      %89 = dma.done [#allocation6], 2048
    $region45: #{tpu_custom_call.1} parent=1 // pred_fallthru
      _
    // Predicated region
    $region46: #{tpu_custom_call.1} parent=1 // pred_check
      _
    $region47: #{tpu_custom_call.1} parent=1 // pred_check_branch
      %91 = sbr.rel (0) target = $region49
    $region48: #{tpu_custom_call.1} parent=1 // pred_region
      %92 = dma.done [#allocation6], 8192
    $region49: #{tpu_custom_call.1} parent=1 // pred_fallthru
      _
    // Predicated region
    $region50: #{tpu_custom_call.1} parent=1 // pred_check
      _
    $region51: #{tpu_custom_call.1} parent=1 // pred_check_branch
      %94 = sbr.rel (0) target = $region53
    $region52: #{tpu_custom_call.1} parent=1 // pred_region
      %95 = dma.done [#allocation9], 8192
    $region53: #{tpu_custom_call.1} parent=1 // pred_fallthru
      _
    // Predicated region
    $region54: #{tpu_custom_call.1} parent=1 // pred_check
      _
    $region55: #{tpu_custom_call.1} parent=1 // pred_check_branch
      %97 = sbr.rel (0) target = $region57
    $region56: #{tpu_custom_call.1} parent=1 // pred_region
      %98 = dma.done [#allocation9], 4096
    $region57: #{tpu_custom_call.1} parent=1 // pred_fallthru
      _
    %v99 = vld [vmem:[%s0] sm:$0xff]
    %v100 = vld [vmem:[%s0 + $0x8] sm:$0xff]
    %v101 = vld [vmem:[#allocation2] sm:$0x77]
    %v102 = vld [vmem:[%s1] sm:$0xff]
    %104 = vset.pattern.permute.xlu0 0
    %105 = vperm.xlu0 %104, %v99
    %v106 = vpop.permute.xlu0 %105
    %109 = vset.pattern.permute.xlu0 0
    %110 = vperm.xlu0 %109, %v100
    %v111 = vpop.permute.xlu0 %110
    %v114 = vlaneseq
    %v115 = vshrl.u32 %v114, 7
    %v116 = vsub.s32 0, %v115
    %v117 = vrot.slane %v102, %v116
    %v118 = vlaneseq
    %v119 = vshrl.u32 %v118, 7
    %v120 = vsub.s32 4, %v119
    %v121 = vrot.slane %v102, %v120
    %v124 = vlaneseq
    %v125 = vshrl.u32 %v124, 7
    %v126 = vsub.s32 0, %v125
    %v127 = vrot.slane %v117, %v126
    %v128 = vlaneseq
    %v129 = vshrl.u32 %v128, 7
    %v130 = vsub.s32 0, %v129
    %v131 = vrot.slane %v121, %v130
    %v132 = vmul.f32 %v106, %v127
    %v133 = vmul.f32 %v106, %v131
    %v134 = vmul.f32 %v111, %v127
    %v135 = vmul.f32 %v111, %v131
    %136 = vset.pattern.permute.xlu0 1
    %137 = vperm.xlu0 %136, %v99
    %v138 = vpop.permute.xlu0 %137
    %140 = vset.pattern.permute.xlu0 1
    %141 = vperm.xlu0 %140, %v100
    %v142 = vpop.permute.xlu0 %141
    %v144 = vlaneseq
    %v145 = vshrl.u32 %v144, 7
    %v146 = vsub.s32 1, %v145
    %v147 = vrot.slane %v102, %v146
    %v148 = vlaneseq
    %v149 = vshrl.u32 %v148, 7
    %v150 = vsub.s32 5, %v149
    %v151 = vrot.slane %v102, %v150
    %v154 = vlaneseq
    %v155 = vshrl.u32 %v154, 7
    %v156 = vsub.s32 1, %v155
    %v157 = vrot.slane %v147, %v156
    %v158 = vlaneseq
    %v159 = vshrl.u32 %v158, 7
    %v160 = vsub.s32 1, %v159
    %v161 = vrot.slane %v151, %v160
    %v162 = vmul.f32 %v138, %v157
    %v163 = vmul.f32 %v138, %v161
    %v164 = vmul.f32 %v142, %v157
    %v165 = vmul.f32 %v142, %v161
    %v166 = vadd.f32 %v132, %v162
    %v167 = vadd.f32 %v133, %v163
    %v168 = vadd.f32 %v134, %v164
    %v169 = vadd.f32 %v135, %v165
    %170 = vset.pattern.permute.xlu0 2
    %171 = vperm.xlu0 %170, %v99
    %v172 = vpop.permute.xlu0 %171
    %174 = vset.pattern.permute.xlu0 2
    %175 = vperm.xlu0 %174, %v100
    %v176 = vpop.permute.xlu0 %175
    %v178 = vlaneseq
    %v179 = vshrl.u32 %v178, 7
    %v180 = vsub.s32 2, %v179
    %v181 = vrot.slane %v102, %v180
    %v182 = vlaneseq
    %v183 = vshrl.u32 %v182, 7
    %v184 = vsub.s32 6, %v183
    %v185 = vrot.slane %v102, %v184
    %v188 = vlaneseq
    %v189 = vshrl.u32 %v188, 7
    %v190 = vsub.s32 2, %v189
    %v191 = vrot.slane %v181, %v190
    %v192 = vlaneseq
    %v193 = vshrl.u32 %v192, 7
    %v194 = vsub.s32 2, %v193
    %v195 = vrot.slane %v185, %v194
    %v196 = vmul.f32 %v172, %v191
    %v197 = vmul.f32 %v172, %v195
    %v198 = vmul.f32 %v176, %v191
    %v199 = vmul.f32 %v176, %v195
    %v200 = vadd.f32 %v166, %v196
    %v201 = vadd.f32 %v167, %v197
    %v202 = vadd.f32 %v168, %v198
    %v203 = vadd.f32 %v169, %v199
    %204 = vset.pattern.permute.xlu0 3
    %205 = vperm.xlu0 %204, %v99
    %v206 = vpop.permute.xlu0 %205
    %208 = vset.pattern.permute.xlu0 3
    %209 = vperm.xlu0 %208, %v100
    %v210 = vpop.permute.xlu0 %209
    %v212 = vlaneseq
    %v213 = vshrl.u32 %v212, 7
    %v214 = vsub.s32 3, %v213
    %v215 = vrot.slane %v102, %v214
    %v216 = vlaneseq
    %v217 = vshrl.u32 %v216, 7
    %v218 = vsub.s32 7, %v217
    %v219 = vrot.slane %v102, %v218
    %v222 = vlaneseq
    %v223 = vshrl.u32 %v222, 7
    %v224 = vsub.s32 3, %v223
    %v225 = vrot.slane %v215, %v224
    %v226 = vlaneseq
    %v227 = vshrl.u32 %v226, 7
    %v228 = vsub.s32 3, %v227
    %v229 = vrot.slane %v219, %v228
    %v230 = vmul.f32 %v206, %v225
    %v231 = vmul.f32 %v206, %v229
    %v232 = vmul.f32 %v210, %v225
    %v233 = vmul.f32 %v210, %v229
    %v234 = vadd.f32 %v200, %v230
    %v235 = vadd.f32 %v201, %v231
    %v236 = vadd.f32 %v202, %v232
    %v237 = vadd.f32 %v203, %v233
    %v239 = vlaneseq
    %v240 = vshrl.u32 %v239, 7
    %v241 = vsub.s32 0, %v240
    %v242 = vrot.slane %v101, %v241
    %v243 = vlaneseq
    %v244 = vshrl.u32 %v243, 7
    %v245 = vsub.s32 4, %v244
    %v246 = vrot.slane %v101, %v245
    %v249 = vlaneseq
    %v250 = vshrl.u32 %v249, 7
    %v251 = vsub.s32 0, %v250
    %v252 = vrot.slane %v242, %v251
    %v253 = vlaneseq
    %v254 = vshrl.u32 %v253, 7
    %v255 = vsub.s32 0, %v254
    %v256 = vrot.slane %v246, %v255
    %v257 = vadd.f32 %v234, %v252
    %v258 = vadd.f32 %v235, %v256
    %v259 = vadd.f32 %v236, %v252
    %v260 = vadd.f32 %v237, %v256
    %v261 = vsub.f32 %v257, %v258
    %v262 = vsub.f32 %v259, %v260
    %v263 = vmul.f32 %v261, %v261
    %v264 = vmul.f32 %v262, %v262
    %v265 = vld [vmem:[#allocation5] sm:$0xff]
    %v266 = vld [vmem:[#allocation5 + $0x8] sm:$0xff]
    %v267 = vld [vmem:[#allocation5 + $0x10] sm:$0xff]
    %v268 = vld [vmem:[#allocation5 + $0x18] sm:$0xff]
    %v269 = vld [vmem:[#allocation5 + $0x20] sm:$0xff]
    %v270 = vld [vmem:[#allocation5 + $0x28] sm:$0xff]
    %v271 = vld [vmem:[#allocation5 + $0x30] sm:$0xff]
    %v272 = vld [vmem:[#allocation5 + $0x38] sm:$0xff]
    %v273 = vld [vmem:[#allocation5 + $0x40] sm:$0xff]
    %v274 = vld [vmem:[#allocation5 + $0x48] sm:$0xff]
    %v275 = vld [vmem:[#allocation5 + $0x50] sm:$0xff]
    %v276 = vld [vmem:[#allocation5 + $0x58] sm:$0xff]
    %v277 = vld [vmem:[#allocation5 + $0x60] sm:$0xff]
    %v278 = vld [vmem:[#allocation5 + $0x68] sm:$0xff]
    %v279 = vld [vmem:[#allocation5 + $0x70] sm:$0xff]
    %v280 = vld [vmem:[#allocation5 + $0x78] sm:$0xff]
    %281 = vmatprep.subr.mxu0 0.0
    %282 = vmatpush1.msra.mxu0 %v265
    %283 = vmatprep.subr.mxu0 0.0
    %284 = vmatpush1.msra.mxu0 %v266
    %285 = vmatprep.subr.mxu0 0.0
    %286 = vmatpush1.msra.mxu0 %v267
    %287 = vmatprep.subr.mxu0 0.0
    %288 = vmatpush1.msra.mxu0 %v268
    %289 = vmatprep.subr.mxu0 0.0
    %290 = vmatpush1.msra.mxu0 %v269
    %291 = vmatprep.subr.mxu0 0.0
    %292 = vmatpush1.msra.mxu0 %v270
    %293 = vmatprep.subr.mxu0 0.0
    %294 = vmatpush1.msra.mxu0 %v271
    %295 = vmatprep.subr.mxu0 0.0
    %296 = vmatpush1.msra.mxu0 %v272
    %297 = vmatprep.subr.mxu0 0.0
    %298 = vmatpush1.msra.mxu0 %v273
    %299 = vmatprep.subr.mxu0 0.0
    %300 = vmatpush1.msra.mxu0 %v274
    %301 = vmatprep.subr.mxu0 0.0
    %302 = vmatpush1.msra.mxu0 %v275
    %303 = vmatprep.subr.mxu0 0.0
    %304 = vmatpush1.msra.mxu0 %v276
    %305 = vmatprep.subr.mxu0 0.0
    %306 = vmatpush1.msra.mxu0 %v277
    %307 = vmatprep.subr.mxu0 0.0
    %308 = vmatpush1.msra.mxu0 %v278
    %309 = vmatprep.subr.mxu0 0.0
    %310 = vmatpush1.msra.mxu0 %v279
    %311 = vmatprep.subr.mxu0 0.0
    %312 = vmatpush1.msra.mxu0 %v280
    %313 = vmatprep.subr.mxu0 0.0
    %314 = vmatpush1.msra.mxu0 0.0
    %315 = vmatprep.subr.mxu0 0.0
    %316 = vmatpush1.msra.mxu0 0.0
    %317 = vmatprep.subr.mxu0 0.0
    %318 = vmatpush1.msra.mxu0 0.0
    %319 = vmatprep.subr.mxu0 0.0
    %320 = vmatpush1.msra.mxu0 0.0
    %321 = vmatprep.subr.mxu0 0.0
    %322 = vmatpush1.msra.mxu0 0.0
    %323 = vmatprep.subr.mxu0 0.0
    %324 = vmatpush1.msra.mxu0 0.0
    %325 = vmatprep.subr.mxu0 0.0
    %326 = vmatpush1.msra.mxu0 0.0
    %327 = vmatprep.subr.mxu0 0.0
    %328 = vmatpush1.msra.mxu0 0.0
    %329 = vmatprep.subr.mxu0 0.0
    %330 = vmatpush1.msra.mxu0 0.0
    %331 = vmatprep.subr.mxu0 0.0
    %332 = vmatpush1.msra.mxu0 0.0
    %333 = vmatprep.subr.mxu0 0.0
    %334 = vmatpush1.msra.mxu0 0.0
    %335 = vmatprep.subr.mxu0 0.0
    %336 = vmatpush1.msra.mxu0 0.0
    %337 = vmatprep.subr.mxu0 0.0
    %338 = vmatpush1.msra.mxu0 0.0
    %339 = vmatprep.subr.mxu0 0.0
    %340 = vmatpush1.msra.mxu0 0.0
    %341 = vmatprep.subr.mxu0 0.0
    %342 = vmatpush1.msra.mxu0 0.0
    %343 = vmatprep.subr.mxu0 0.0
    %344 = vmatpush1.msra.mxu0 0.0
    %345 = vmatprep.mubr.f32.mxu0 0.0
    %346 = vmatmul.mubr.f32.gmra.mrb[0].mxu0 %v263
    %v347 = vpop.f32.mrb[0].mxu0
    %v348 = vadd.f32 1e-05, %v347
    %v349 = vpop.f32.mrb[0].mxu0
    %350 = vmatprep.mubr.f32.mxu0 0.0
    %351 = vmatmul.mubr.f32.gmra.mrb[0].mxu0 %v264
    %v352 = vpop.f32.mrb[0].mxu0
    %v353 = vadd.f32 1e-05, %v352
    %v354 = vpop.f32.mrb[0].mxu0
    %355 = vdwg.mxu0
    %v356 = vrsqrt.pop %v348
    %v357 = vrsqrt.pop %v353
    %v358 = vmul.f32 %v261, %v356
    %v359 = vmul.f32 %v262, %v357
    %v360 = vlaneseq
    %v361 = vshrl.u32 %v360, 7
    %v362 = vsub.s32 1, %v361
    %v363 = vrot.slane %v101, %v362
    %v364 = vmul.f32 %v358, %v363
    %v365 = vmul.f32 %v359, %v363
    %v366 = vlaneseq
    %v367 = vshrl.u32 %v366, 7
    %v368 = vsub.s32 2, %v367
    %v369 = vrot.slane %v101, %v368
    %v370 = vadd.f32 %v364, %v369
    %v371 = vadd.f32 %v365, %v369
    %v372 = vmax.f32 %v370, 0.0
    %v373 = vmax.f32 %v371, 0.0
    %v374 = vld [vmem:[%s5] sm:$0x77]
    %v375 = vld [vmem:[%s5 + $0x8] sm:$0x77]
    %v376 = vld [vmem:[#allocation7] sm:$0xff]
    %v377 = vld [vmem:[#allocation7 + $0x8] sm:$0xff]
    %v378 = vld [vmem:[#allocation7 + $0x10] sm:$0xff]
    %v379 = vld [vmem:[#allocation7 + $0x18] sm:$0xff]
    %v380 = vld [vmem:[#allocation7 + $0x20] sm:$0xff]
    %v381 = vld [vmem:[#allocation7 + $0x28] sm:$0xff]
    %v382 = vld [vmem:[#allocation7 + $0x30] sm:$0xff]
    %v383 = vld [vmem:[#allocation7 + $0x38] sm:$0xff]
    %v384 = vld [vmem:[#allocation7 + $0x40] sm:$0xff]
    %v385 = vld [vmem:[#allocation7 + $0x48] sm:$0xff]
    %v386 = vld [vmem:[#allocation7 + $0x50] sm:$0xff]
    %v387 = vld [vmem:[#allocation7 + $0x58] sm:$0xff]
    %v388 = vld [vmem:[#allocation7 + $0x60] sm:$0xff]
    %v389 = vld [vmem:[#allocation7 + $0x68] sm:$0xff]
    %v390 = vld [vmem:[#allocation7 + $0x70] sm:$0xff]
    %v391 = vld [vmem:[#allocation7 + $0x78] sm:$0xff]
    %v392 = vld [vmem:[#allocation7 + $0x80] sm:$0xff]
    %v393 = vld [vmem:[#allocation7 + $0x88] sm:$0xff]
    %v394 = vld [vmem:[#allocation7 + $0x90] sm:$0xff]
    %v395 = vld [vmem:[#allocation7 + $0x98] sm:$0xff]
    %v396 = vld [vmem:[#allocation7 + $0xa0] sm:$0xff]
    %v397 = vld [vmem:[#allocation7 + $0xa8] sm:$0xff]
    %v398 = vld [vmem:[#allocation7 + $0xb0] sm:$0xff]
    %v399 = vld [vmem:[#allocation7 + $0xb8] sm:$0xff]
    %v400 = vld [vmem:[#allocation7 + $0xc0] sm:$0xff]
    %v401 = vld [vmem:[#allocation7 + $0xc8] sm:$0xff]
    %v402 = vld [vmem:[#allocation7 + $0xd0] sm:$0xff]
    %v403 = vld [vmem:[#allocation7 + $0xd8] sm:$0xff]
    %v404 = vld [vmem:[#allocation7 + $0xe0] sm:$0xff]
    %v405 = vld [vmem:[#allocation7 + $0xe8] sm:$0xff]
    %v406 = vld [vmem:[#allocation7 + $0xf0] sm:$0xff]
    %v407 = vld [vmem:[#allocation7 + $0xf8] sm:$0xff]
    %v408 = vld [vmem:[#allocation7 + $0x100] sm:$0xff]
    %v409 = vld [vmem:[#allocation7 + $0x108] sm:$0xff]
    %v410 = vld [vmem:[#allocation7 + $0x110] sm:$0xff]
    %v411 = vld [vmem:[#allocation7 + $0x118] sm:$0xff]
    %v412 = vld [vmem:[#allocation7 + $0x120] sm:$0xff]
    %v413 = vld [vmem:[#allocation7 + $0x128] sm:$0xff]
    %v414 = vld [vmem:[#allocation7 + $0x130] sm:$0xff]
    %v415 = vld [vmem:[#allocation7 + $0x138] sm:$0xff]
    %v416 = vld [vmem:[#allocation7 + $0x140] sm:$0xff]
    %v417 = vld [vmem:[#allocation7 + $0x148] sm:$0xff]
    %v418 = vld [vmem:[#allocation7 + $0x150] sm:$0xff]
    %v419 = vld [vmem:[#allocation7 + $0x158] sm:$0xff]
    %v420 = vld [vmem:[#allocation7 + $0x160] sm:$0xff]
    %v421 = vld [vmem:[#allocation7 + $0x168] sm:$0xff]
    %v422 = vld [vmem:[#allocation7 + $0x170] sm:$0xff]
    %v423 = vld [vmem:[#allocation7 + $0x178] sm:$0xff]
    %v424 = vld [vmem:[#allocation7 + $0x180] sm:$0xff]
    %v425 = vld [vmem:[#allocation7 + $0x188] sm:$0xff]
    %v426 = vld [vmem:[#allocation7 + $0x190] sm:$0xff]
    %v427 = vld [vmem:[#allocation7 + $0x198] sm:$0xff]
    %v428 = vld [vmem:[#allocation7 + $0x1a0] sm:$0xff]
    %v429 = vld [vmem:[#allocation7 + $0x1a8] sm:$0xff]
    %v430 = vld [vmem:[#allocation7 + $0x1b0] sm:$0xff]
    %v431 = vld [vmem:[#allocation7 + $0x1b8] sm:$0xff]
    %v432 = vld [vmem:[#allocation7 + $0x1c0] sm:$0xff]
    %v433 = vld [vmem:[#allocation7 + $0x1c8] sm:$0xff]
    %v434 = vld [vmem:[#allocation7 + $0x1d0] sm:$0xff]
    %v435 = vld [vmem:[#allocation7 + $0x1d8] sm:$0xff]
    %v436 = vld [vmem:[#allocation7 + $0x1e0] sm:$0xff]
    %v437 = vld [vmem:[#allocation7 + $0x1e8] sm:$0xff]
    %v438 = vld [vmem:[#allocation7 + $0x1f0] sm:$0xff]
    %v439 = vld [vmem:[#allocation7 + $0x1f8] sm:$0xff]
    %v442 = vlaneseq
    %v443 = vshrl.u32 %v442, 7
    %v444 = vsub.s32 0, %v443
    %v445 = vrot.slane %v374, %v444
    %v446 = vlaneseq
    %v447 = vshrl.u32 %v446, 7
    %v448 = vsub.s32 4, %v447
    %v449 = vrot.slane %v374, %v448
    %v450 = vlaneseq
    %v451 = vshrl.u32 %v450, 7
    %v452 = vsub.s32 0, %v451
    %v453 = vrot.slane %v375, %v452
    %v454 = vlaneseq
    %v455 = vshrl.u32 %v454, 7
    %v456 = vsub.s32 4, %v455
    %v457 = vrot.slane %v375, %v456
    %v462 = vlaneseq
    %v463 = vshrl.u32 %v462, 7
    %v464 = vsub.s32 0, %v463
    %v465 = vrot.slane %v445, %v464
    %v466 = vlaneseq
    %v467 = vshrl.u32 %v466, 7
    %v468 = vsub.s32 0, %v467
    %v469 = vrot.slane %v449, %v468
    %v470 = vlaneseq
    %v471 = vshrl.u32 %v470, 7
    %v472 = vsub.s32 0, %v471
    %v473 = vrot.slane %v453, %v472
    %v474 = vlaneseq
    %v475 = vshrl.u32 %v474, 7
    %v476 = vsub.s32 0, %v475
    %v477 = vrot.slane %v457, %v476
    %478 = vmatprep.subr.mxu0 %v377
    %479 = vmatpush1.msra.mxu0 %v376
    %480 = vmatprep.subr.mxu0 %v381
    %481 = vmatpush1.msra.mxu0 %v380
    %482 = vmatprep.subr.mxu0 %v385
    %483 = vmatpush1.msra.mxu0 %v384
    %484 = vmatprep.subr.mxu0 %v389
    %485 = vmatpush1.msra.mxu0 %v388
    %486 = vmatprep.subr.mxu0 %v393
    %487 = vmatpush1.msra.mxu0 %v392
    %488 = vmatprep.subr.mxu0 %v397
    %489 = vmatpush1.msra.mxu0 %v396
    %490 = vmatprep.subr.mxu0 %v401
    %491 = vmatpush1.msra.mxu0 %v400
    %492 = vmatprep.subr.mxu0 %v405
    %493 = vmatpush1.msra.mxu0 %v404
    %494 = vmatprep.subr.mxu0 %v409
    %495 = vmatpush1.msra.mxu0 %v408
    %496 = vmatprep.subr.mxu0 %v413
    %497 = vmatpush1.msra.mxu0 %v412
    %498 = vmatprep.subr.mxu0 %v417
    %499 = vmatpush1.msra.mxu0 %v416
    %500 = vmatprep.subr.mxu0 %v421
    %501 = vmatpush1.msra.mxu0 %v420
    %502 = vmatprep.subr.mxu0 %v425
    %503 = vmatpush1.msra.mxu0 %v424
    %504 = vmatprep.subr.mxu0 %v429
    %505 = vmatpush1.msra.mxu0 %v428
    %506 = vmatprep.subr.mxu0 %v433
    %507 = vmatpush1.msra.mxu0 %v432
    %508 = vmatprep.subr.mxu0 %v437
    %509 = vmatpush1.msra.mxu0 %v436
    %510 = vmatprep.subr.mxu0 0.0
    %511 = vmatpush1.msra.mxu0 0.0
    %512 = vmatprep.subr.mxu0 0.0
    %513 = vmatpush1.msra.mxu0 0.0
    %514 = vmatprep.subr.mxu0 0.0
    %515 = vmatpush1.msra.mxu0 0.0
    %516 = vmatprep.subr.mxu0 0.0
    %517 = vmatpush1.msra.mxu0 0.0
    %518 = vmatprep.subr.mxu0 0.0
    %519 = vmatpush1.msra.mxu0 0.0
    %520 = vmatprep.subr.mxu0 0.0
    %521 = vmatpush1.msra.mxu0 0.0
    %522 = vmatprep.subr.mxu0 0.0
    %523 = vmatpush1.msra.mxu0 0.0
    %524 = vmatprep.subr.mxu0 0.0
    %525 = vmatpush1.msra.mxu0 0.0
    %526 = vmatprep.subr.mxu0 0.0
    %527 = vmatpush1.msra.mxu0 0.0
    %528 = vmatprep.subr.mxu0 0.0
    %529 = vmatpush1.msra.mxu0 0.0
    %530 = vmatprep.subr.mxu0 0.0
    %531 = vmatpush1.msra.mxu0 0.0
    %532 = vmatprep.subr.mxu0 0.0
    %533 = vmatpush1.msra.mxu0 0.0
    %534 = vmatprep.subr.mxu0 0.0
    %535 = vmatpush1.msra.mxu0 0.0
    %536 = vmatprep.subr.mxu0 0.0
    %537 = vmatpush1.msra.mxu0 0.0
    %538 = vmatprep.subr.mxu0 0.0
    %539 = vmatpush1.msra.mxu0 0.0
    %540 = vmatprep.subr.mxu0 0.0
    %541 = vmatpush1.msra.mxu0 0.0
    %542 = vmatprep.mubr.f32.mxu0 0.0
    %543 = vmatmul.mubr.f32.gmra.mrb[0].mxu0 %v372
    %v544 = vpop.f32.mrb[0].mxu0
    %v545 = vadd.f32 %v465, %v544
    %v546 = vpop.f32.mrb[0].mxu0
    %v547 = vadd.f32 %v469, %v546
    %548 = vmatprep.mubr.f32.mxu0 0.0
    %549 = vmatmul.mubr.f32.gmra.mrb[0].mxu0 %v373
    %v550 = vpop.f32.mrb[0].mxu0
    %v551 = vadd.f32 %v465, %v550
    %v552 = vpop.f32.mrb[0].mxu0
    %v553 = vadd.f32 %v469, %v552
    %554 = vdwg.mxu0
    %555 = vmatprep.subr.mxu0 %v379
    %556 = vmatpush1.msra.mxu0 %v378
    %557 = vmatprep.subr.mxu0 %v383
    %558 = vmatpush1.msra.mxu0 %v382
    %559 = vmatprep.subr.mxu0 %v387
    %560 = vmatpush1.msra.mxu0 %v386
    %561 = vmatprep.subr.mxu0 %v391
    %562 = vmatpush1.msra.mxu0 %v390
    %563 = vmatprep.subr.mxu0 %v395
    %564 = vmatpush1.msra.mxu0 %v394
    %565 = vmatprep.subr.mxu0 %v399
    %566 = vmatpush1.msra.mxu0 %v398
    %567 = vmatprep.subr.mxu0 %v403
    %568 = vmatpush1.msra.mxu0 %v402
    %569 = vmatprep.subr.mxu0 %v407
    %570 = vmatpush1.msra.mxu0 %v406
    %571 = vmatprep.subr.mxu0 %v411
    %572 = vmatpush1.msra.mxu0 %v410
    %573 = vmatprep.subr.mxu0 %v415
    %574 = vmatpush1.msra.mxu0 %v414
    %575 = vmatprep.subr.mxu0 %v419
    %576 = vmatpush1.msra.mxu0 %v418
    %577 = vmatprep.subr.mxu0 %v423
    %578 = vmatpush1.msra.mxu0 %v422
    %579 = vmatprep.subr.mxu0 %v427
    %580 = vmatpush1.msra.mxu0 %v426
    %581 = vmatprep.subr.mxu0 %v431
    %582 = vmatpush1.msra.mxu0 %v430
    %583 = vmatprep.subr.mxu0 %v435
    %584 = vmatpush1.msra.mxu0 %v434
    %585 = vmatprep.subr.mxu0 %v439
    %586 = vmatpush1.msra.mxu0 %v438
    %587 = vmatprep.subr.mxu0 0.0
    %588 = vmatpush1.msra.mxu0 0.0
    %589 = vmatprep.subr.mxu0 0.0
    %590 = vmatpush1.msra.mxu0 0.0
    %591 = vmatprep.subr.mxu0 0.0
    %592 = vmatpush1.msra.mxu0 0.0
    %593 = vmatprep.subr.mxu0 0.0
    %594 = vmatpush1.msra.mxu0 0.0
    %595 = vmatprep.subr.mxu0 0.0
    %596 = vmatpush1.msra.mxu0 0.0
    %597 = vmatprep.subr.mxu0 0.0
    %598 = vmatpush1.msra.mxu0 0.0
    %599 = vmatprep.subr.mxu0 0.0
    %600 = vmatpush1.msra.mxu0 0.0
    %601 = vmatprep.subr.mxu0 0.0
    %602 = vmatpush1.msra.mxu0 0.0
    %603 = vmatprep.subr.mxu0 0.0
    %604 = vmatpush1.msra.mxu0 0.0
    %605 = vmatprep.subr.mxu0 0.0
    %606 = vmatpush1.msra.mxu0 0.0
    %607 = vmatprep.subr.mxu0 0.0
    %608 = vmatpush1.msra.mxu0 0.0
    %609 = vmatprep.subr.mxu0 0.0
    %610 = vmatpush1.msra.mxu0 0.0
    %611 = vmatprep.subr.mxu0 0.0
    %612 = vmatpush1.msra.mxu0 0.0
    %613 = vmatprep.subr.mxu0 0.0
    %614 = vmatpush1.msra.mxu0 0.0
    %615 = vmatprep.subr.mxu0 0.0
    %616 = vmatpush1.msra.mxu0 0.0
    %617 = vmatprep.subr.mxu0 0.0
    %618 = vmatpush1.msra.mxu0 0.0
    %619 = vmatprep.mubr.f32.mxu0 0.0
    %620 = vmatmul.mubr.f32.gmra.mrb[0].mxu0 %v372
    %v621 = vpop.f32.mrb[0].mxu0
    %v622 = vadd.f32 %v473, %v621
    %v623 = vpop.f32.mrb[0].mxu0
    %v624 = vadd.f32 %v477, %v623
    %625 = vmatprep.mubr.f32.mxu0 0.0
    %626 = vmatmul.mubr.f32.gmra.mrb[0].mxu0 %v373
    %v627 = vpop.f32.mrb[0].mxu0
    %v628 = vadd.f32 %v473, %v627
    %v629 = vpop.f32.mrb[0].mxu0
    %v630 = vadd.f32 %v477, %v629
    %631 = vdwg.mxu0
    %v632 = vsub.f32 %v545, %v622
    %v633 = vsub.f32 %v547, %v624
    %v634 = vsub.f32 %v551, %v628
    %v635 = vsub.f32 %v553, %v630
    %v636 = vmul.f32 %v632, %v632
    %v637 = vmul.f32 %v633, %v633
    %v638 = vmul.f32 %v634, %v634
    %v639 = vmul.f32 %v635, %v635
    %v640 = vld [vmem:[#allocation8] sm:$0xff]
    %v641 = vld [vmem:[#allocation8 + $0x8] sm:$0xff]
    %v642 = vld [vmem:[#allocation8 + $0x10] sm:$0xff]
    %v643 = vld [vmem:[#allocation8 + $0x18] sm:$0xff]
    %v644 = vld [vmem:[#allocation8 + $0x20] sm:$0xff]
    %v645 = vld [vmem:[#allocation8 + $0x28] sm:$0xff]
    %v646 = vld [vmem:[#allocation8 + $0x30] sm:$0xff]
    %v647 = vld [vmem:[#allocation8 + $0x38] sm:$0xff]
    %v648 = vld [vmem:[#allocation8 + $0x40] sm:$0xff]
    %v649 = vld [vmem:[#allocation8 + $0x48] sm:$0xff]
    %v650 = vld [vmem:[#allocation8 + $0x50] sm:$0xff]
    %v651 = vld [vmem:[#allocation8 + $0x58] sm:$0xff]
    %v652 = vld [vmem:[#allocation8 + $0x60] sm:$0xff]
    %v653 = vld [vmem:[#allocation8 + $0x68] sm:$0xff]
    %v654 = vld [vmem:[#allocation8 + $0x70] sm:$0xff]
    %v655 = vld [vmem:[#allocation8 + $0x78] sm:$0xff]
    %v656 = vld [vmem:[#allocation8 + $0x80] sm:$0xff]
    %v657 = vld [vmem:[#allocation8 + $0x88] sm:$0xff]
    %v658 = vld [vmem:[#allocation8 + $0x90] sm:$0xff]
    %v659 = vld [vmem:[#allocation8 + $0x98] sm:$0xff]
    %v660 = vld [vmem:[#allocation8 + $0xa0] sm:$0xff]
    %v661 = vld [vmem:[#allocation8 + $0xa8] sm:$0xff]
    %v662 = vld [vmem:[#allocation8 + $0xb0] sm:$0xff]
    %v663 = vld [vmem:[#allocation8 + $0xb8] sm:$0xff]
    %v664 = vld [vmem:[#allocation8 + $0xc0] sm:$0xff]
    %v665 = vld [vmem:[#allocation8 + $0xc8] sm:$0xff]
    %v666 = vld [vmem:[#allocation8 + $0xd0] sm:$0xff]
    %v667 = vld [vmem:[#allocation8 + $0xd8] sm:$0xff]
    %v668 = vld [vmem:[#allocation8 + $0xe0] sm:$0xff]
    %v669 = vld [vmem:[#allocation8 + $0xe8] sm:$0xff]
    %v670 = vld [vmem:[#allocation8 + $0xf0] sm:$0xff]
    %v671 = vld [vmem:[#allocation8 + $0xf8] sm:$0xff]
    %v672 = vld [vmem:[#allocation8 + $0x100] sm:$0xff]
    %v673 = vld [vmem:[#allocation8 + $0x108] sm:$0xff]
    %v674 = vld [vmem:[#allocation8 + $0x110] sm:$0xff]
    %v675 = vld [vmem:[#allocation8 + $0x118] sm:$0xff]
    %v676 = vld [vmem:[#allocation8 + $0x120] sm:$0xff]
    %v677 = vld [vmem:[#allocation8 + $0x128] sm:$0xff]
    %v678 = vld [vmem:[#allocation8 + $0x130] sm:$0xff]
    %v679 = vld [vmem:[#allocation8 + $0x138] sm:$0xff]
    %v680 = vld [vmem:[#allocation8 + $0x140] sm:$0xff]
    %v681 = vld [vmem:[#allocation8 + $0x148] sm:$0xff]
    %v682 = vld [vmem:[#allocation8 + $0x150] sm:$0xff]
    %v683 = vld [vmem:[#allocation8 + $0x158] sm:$0xff]
    %v684 = vld [vmem:[#allocation8 + $0x160] sm:$0xff]
    %v685 = vld [vmem:[#allocation8 + $0x168] sm:$0xff]
    %v686 = vld [vmem:[#allocation8 + $0x170] sm:$0xff]
    %v687 = vld [vmem:[#allocation8 + $0x178] sm:$0xff]
    %v688 = vld [vmem:[#allocation8 + $0x180] sm:$0xff]
    %v689 = vld [vmem:[#allocation8 + $0x188] sm:$0xff]
    %v690 = vld [vmem:[#allocation8 + $0x190] sm:$0xff]
    %v691 = vld [vmem:[#allocation8 + $0x198] sm:$0xff]
    %v692 = vld [vmem:[#allocation8 + $0x1a0] sm:$0xff]
    %v693 = vld [vmem:[#allocation8 + $0x1a8] sm:$0xff]
    %v694 = vld [vmem:[#allocation8 + $0x1b0] sm:$0xff]
    %v695 = vld [vmem:[#allocation8 + $0x1b8] sm:$0xff]
    %v696 = vld [vmem:[#allocation8 + $0x1c0] sm:$0xff]
    %v697 = vld [vmem:[#allocation8 + $0x1c8] sm:$0xff]
    %v698 = vld [vmem:[#allocation8 + $0x1d0] sm:$0xff]
    %v699 = vld [vmem:[#allocation8 + $0x1d8] sm:$0xff]
    %v700 = vld [vmem:[#allocation8 + $0x1e0] sm:$0xff]
    %v701 = vld [vmem:[#allocation8 + $0x1e8] sm:$0xff]
    %v702 = vld [vmem:[#allocation8 + $0x1f0] sm:$0xff]
    %v703 = vld [vmem:[#allocation8 + $0x1f8] sm:$0xff]
    %704 = vmatprep.subr.mxu0 %v641
    %705 = vmatpush1.msra.mxu0 %v640
    %706 = vmatprep.subr.mxu0 %v643
    %707 = vmatpush1.msra.mxu0 %v642
    %708 = vmatprep.subr.mxu0 %v645
    %709 = vmatpush1.msra.mxu0 %v644
    %710 = vmatprep.subr.mxu0 %v647
    %711 = vmatpush1.msra.mxu0 %v646
    %712 = vmatprep.subr.mxu0 %v649
    %713 = vmatpush1.msra.mxu0 %v648
    %714 = vmatprep.subr.mxu0 %v651
    %715 = vmatpush1.msra.mxu0 %v650
    %716 = vmatprep.subr.mxu0 %v653
    %717 = vmatpush1.msra.mxu0 %v652
    %718 = vmatprep.subr.mxu0 %v655
    %719 = vmatpush1.msra.mxu0 %v654
    %720 = vmatprep.subr.mxu0 %v657
    %721 = vmatpush1.msra.mxu0 %v656
    %722 = vmatprep.subr.mxu0 %v659
    %723 = vmatpush1.msra.mxu0 %v658
    %724 = vmatprep.subr.mxu0 %v661
    %725 = vmatpush1.msra.mxu0 %v660
    %726 = vmatprep.subr.mxu0 %v663
    %727 = vmatpush1.msra.mxu0 %v662
    %728 = vmatprep.subr.mxu0 %v665
    %729 = vmatpush1.msra.mxu0 %v664
    %730 = vmatprep.subr.mxu0 %v667
    %731 = vmatpush1.msra.mxu0 %v666
    %732 = vmatprep.subr.mxu0 %v669
    %733 = vmatpush1.msra.mxu0 %v668
    %734 = vmatprep.subr.mxu0 %v671
    %735 = vmatpush1.msra.mxu0 %v670
    %736 = vmatprep.subr.mxu0 %v673
    %737 = vmatpush1.msra.mxu0 %v672
    %738 = vmatprep.subr.mxu0 %v675
    %739 = vmatpush1.msra.mxu0 %v674
    %740 = vmatprep.subr.mxu0 %v677
    %741 = vmatpush1.msra.mxu0 %v676
    %742 = vmatprep.subr.mxu0 %v679
    %743 = vmatpush1.msra.mxu0 %v678
    %744 = vmatprep.subr.mxu0 %v681
    %745 = vmatpush1.msra.mxu0 %v680
    %746 = vmatprep.subr.mxu0 %v683
    %747 = vmatpush1.msra.mxu0 %v682
    %748 = vmatprep.subr.mxu0 %v685
    %749 = vmatpush1.msra.mxu0 %v684
    %750 = vmatprep.subr.mxu0 %v687
    %751 = vmatpush1.msra.mxu0 %v686
    %752 = vmatprep.subr.mxu0 %v689
    %753 = vmatpush1.msra.mxu0 %v688
    %754 = vmatprep.subr.mxu0 %v691
    %755 = vmatpush1.msra.mxu0 %v690
    %756 = vmatprep.subr.mxu0 %v693
    %757 = vmatpush1.msra.mxu0 %v692
    %758 = vmatprep.subr.mxu0 %v695
    %759 = vmatpush1.msra.mxu0 %v694
    %760 = vmatprep.subr.mxu0 %v697
    %761 = vmatpush1.msra.mxu0 %v696
    %762 = vmatprep.subr.mxu0 %v699
    %763 = vmatpush1.msra.mxu0 %v698
    %764 = vmatprep.subr.mxu0 %v701
    %765 = vmatpush1.msra.mxu0 %v700
    %766 = vmatprep.subr.mxu0 %v703
    %767 = vmatpush1.msra.mxu0 %v702
    %768 = vmatprep.mubr.f32.mxu0 %v637
    %769 = vmatmul.mubr.f32.gmra.mrb[0].mxu0 %v636
    %v770 = vpop.f32.mrb[0].mxu0
    %v771 = vadd.f32 1e-05, %v770
    %v772 = vpop.f32.mrb[0].mxu0
    %v773 = vadd.f32 1e-05, %v772
    %774 = vmatprep.mubr.f32.mxu0 %v639
    %775 = vmatmul.mubr.f32.gmra.mrb[0].mxu0 %v638
    %v776 = vpop.f32.mrb[0].mxu0
    %v777 = vadd.f32 1e-05, %v776
    %v778 = vpop.f32.mrb[0].mxu0
    %v779 = vadd.f32 1e-05, %v778
    %780 = vdwg.mxu0
    %v781 = vrsqrt.pop %v771
    %v782 = vrsqrt.pop %v773
    %v783 = vrsqrt.pop %v777
    %v784 = vrsqrt.pop %v779
    %v785 = vmul.f32 %v632, %v781
    %v786 = vmul.f32 %v633, %v782
    %v787 = vmul.f32 %v634, %v783
    %v788 = vmul.f32 %v635, %v784
    %v789 = vlaneseq
    %v790 = vshrl.u32 %v789, 7
    %v791 = vsub.s32 1, %v790
    %v792 = vrot.slane %v374, %v791
    %v793 = vlaneseq
    %v794 = vshrl.u32 %v793, 7
    %v795 = vsub.s32 5, %v794
    %v796 = vrot.slane %v374, %v795
    %v799 = vlaneseq
    %v800 = vshrl.u32 %v799, 7
    %v801 = vsub.s32 1, %v800
    %v802 = vrot.slane %v792, %v801
    %v803 = vlaneseq
    %v804 = vshrl.u32 %v803, 7
    %v805 = vsub.s32 1, %v804
    %v806 = vrot.slane %v796, %v805
    %v807 = vmul.f32 %v785, %v802
    %v808 = vmul.f32 %v786, %v806
    %v809 = vmul.f32 %v787, %v802
    %v810 = vmul.f32 %v788, %v806
    %v811 = vlaneseq
    %v812 = vshrl.u32 %v811, 7
    %v813 = vsub.s32 2, %v812
    %v814 = vrot.slane %v374, %v813
    %v815 = vlaneseq
    %v816 = vshrl.u32 %v815, 7
    %v817 = vsub.s32 6, %v816
    %v818 = vrot.slane %v374, %v817
    %v821 = vlaneseq
    %v822 = vshrl.u32 %v821, 7
    %v823 = vsub.s32 2, %v822
    %v824 = vrot.slane %v814, %v823
    %v825 = vlaneseq
    %v826 = vshrl.u32 %v825, 7
    %v827 = vsub.s32 2, %v826
    %v828 = vrot.slane %v818, %v827
    %v829 = vadd.f32 %v807, %v824
    %v830 = vadd.f32 %v808, %v828
    %v831 = vadd.f32 %v809, %v824
    %v832 = vadd.f32 %v810, %v828
    %v833 = vmax.f32 %v829, 0.0
    %v834 = vmax.f32 %v830, 0.0
    %v835 = vmax.f32 %v831, 0.0
    %v836 = vmax.f32 %v832, 0.0
    %v837 = vld [vmem:[#allocation10] sm:$0xff]
    %v838 = vld [vmem:[#allocation10 + $0x8] sm:$0xff]
    %v839 = vld [vmem:[#allocation10 + $0x10] sm:$0xff]
    %v840 = vld [vmem:[#allocation10 + $0x18] sm:$0xff]
    %v841 = vld [vmem:[#allocation10 + $0x20] sm:$0xff]
    %v842 = vld [vmem:[#allocation10 + $0x28] sm:$0xff]
    %v843 = vld [vmem:[#allocation10 + $0x30] sm:$0xff]
    %v844 = vld [vmem:[#allocation10 + $0x38] sm:$0xff]
    %v845 = vld [vmem:[#allocation10 + $0x40] sm:$0xff]
    %v846 = vld [vmem:[#allocation10 + $0x48] sm:$0xff]
    %v847 = vld [vmem:[#allocation10 + $0x50] sm:$0xff]
    %v848 = vld [vmem:[#allocation10 + $0x58] sm:$0xff]
    %v849 = vld [vmem:[#allocation10 + $0x60] sm:$0xff]
    %v850 = vld [vmem:[#allocation10 + $0x68] sm:$0xff]
    %v851 = vld [vmem:[#allocation10 + $0x70] sm:$0xff]
    %v852 = vld [vmem:[#allocation10 + $0x78] sm:$0xff]
    %v853 = vld [vmem:[#allocation10 + $0x80] sm:$0xff]
    %v854 = vld [vmem:[#allocation10 + $0x88] sm:$0xff]
    %v855 = vld [vmem:[#allocation10 + $0x90] sm:$0xff]
    %v856 = vld [vmem:[#allocation10 + $0x98] sm:$0xff]
    %v857 = vld [vmem:[#allocation10 + $0xa0] sm:$0xff]
    %v858 = vld [vmem:[#allocation10 + $0xa8] sm:$0xff]
    %v859 = vld [vmem:[#allocation10 + $0xb0] sm:$0xff]
    %v860 = vld [vmem:[#allocation10 + $0xb8] sm:$0xff]
    %v861 = vld [vmem:[#allocation10 + $0xc0] sm:$0xff]
    %v862 = vld [vmem:[#allocation10 + $0xc8] sm:$0xff]
    %v863 = vld [vmem:[#allocation10 + $0xd0] sm:$0xff]
    %v864 = vld [vmem:[#allocation10 + $0xd8] sm:$0xff]
    %v865 = vld [vmem:[#allocation10 + $0xe0] sm:$0xff]
    %v866 = vld [vmem:[#allocation10 + $0xe8] sm:$0xff]
    %v867 = vld [vmem:[#allocation10 + $0xf0] sm:$0xff]
    %v868 = vld [vmem:[#allocation10 + $0xf8] sm:$0xff]
    %v869 = vld [vmem:[%s8] sm:$0x1]
    %v871 = vlaneseq
    %v872 = vshrl.u32 %v871, 7
    %v873 = vsub.s32 0, %v872
    %v874 = vrot.slane %v869, %v873
    %876 = vmatprep.subr.mxu0 0.0
    %877 = vmatpush1.msra.mxu0 %v837
    %878 = vmatprep.subr.mxu0 0.0
    %879 = vmatpush1.msra.mxu0 %v838
    %880 = vmatprep.subr.mxu0 0.0
    %881 = vmatpush1.msra.mxu0 %v839
    %882 = vmatprep.subr.mxu0 0.0
    %883 = vmatpush1.msra.mxu0 %v840
    %884 = vmatprep.subr.mxu0 0.0
    %885 = vmatpush1.msra.mxu0 %v841
    %886 = vmatprep.subr.mxu0 0.0
    %887 = vmatpush1.msra.mxu0 %v842
    %888 = vmatprep.subr.mxu0 0.0
    %889 = vmatpush1.msra.mxu0 %v843
    %890 = vmatprep.subr.mxu0 0.0
    %891 = vmatpush1.msra.mxu0 %v844
    %892 = vmatprep.subr.mxu0 0.0
    %893 = vmatpush1.msra.mxu0 %v845
    %894 = vmatprep.subr.mxu0 0.0
    %895 = vmatpush1.msra.mxu0 %v846
    %896 = vmatprep.subr.mxu0 0.0
    %897 = vmatpush1.msra.mxu0 %v847
    %898 = vmatprep.subr.mxu0 0.0
    %899 = vmatpush1.msra.mxu0 %v848
    %900 = vmatprep.subr.mxu0 0.0
    %901 = vmatpush1.msra.mxu0 %v849
    %902 = vmatprep.subr.mxu0 0.0
    %903 = vmatpush1.msra.mxu0 %v850
    %904 = vmatprep.subr.mxu0 0.0
    %905 = vmatpush1.msra.mxu0 %v851
    %906 = vmatprep.subr.mxu0 0.0
    %907 = vmatpush1.msra.mxu0 %v852
    %908 = vmatprep.subr.mxu0 0.0
    %909 = vmatpush1.msra.mxu0 %v853
    %910 = vmatprep.subr.mxu0 0.0
    %911 = vmatpush1.msra.mxu0 %v854
    %912 = vmatprep.subr.mxu0 0.0
    %913 = vmatpush1.msra.mxu0 %v855
    %914 = vmatprep.subr.mxu0 0.0
    %915 = vmatpush1.msra.mxu0 %v856
    %916 = vmatprep.subr.mxu0 0.0
    %917 = vmatpush1.msra.mxu0 %v857
    %918 = vmatprep.subr.mxu0 0.0
    %919 = vmatpush1.msra.mxu0 %v858
    %920 = vmatprep.subr.mxu0 0.0
    %921 = vmatpush1.msra.mxu0 %v859
    %922 = vmatprep.subr.mxu0 0.0
    %923 = vmatpush1.msra.mxu0 %v860
    %924 = vmatprep.subr.mxu0 0.0
    %925 = vmatpush1.msra.mxu0 %v861
    %926 = vmatprep.subr.mxu0 0.0
    %927 = vmatpush1.msra.mxu0 %v862
    %928 = vmatprep.subr.mxu0 0.0
    %929 = vmatpush1.msra.mxu0 %v863
    %930 = vmatprep.subr.mxu0 0.0
    %931 = vmatpush1.msra.mxu0 %v864
    %932 = vmatprep.subr.mxu0 0.0
    %933 = vmatpush1.msra.mxu0 %v865
    %934 = vmatprep.subr.mxu0 0.0
    %935 = vmatpush1.msra.mxu0 %v866
    %936 = vmatprep.subr.mxu0 0.0
    %937 = vmatpush1.msra.mxu0 %v867
    %938 = vmatprep.subr.mxu0 0.0
    %939 = vmatpush1.msra.mxu0 %v868
    %940 = vmatprep.mubr.f32.mxu0 %v834
    %941 = vmatmul.mubr.f32.gmra.mrb[0].mxu0 %v833
    %v942 = vpop.f32.mrb[0].mxu0
    %v943 = vadd.f32 %v874, %v942
    %v944 = vpop.f32.mrb[0].mxu0
    %945 = vmatprep.mubr.f32.mxu0 %v836
    %946 = vmatmul.mubr.f32.gmra.mrb[0].mxu0 %v835
    %v947 = vpop.f32.mrb[0].mxu0
    %v948 = vadd.f32 %v874, %v947
    %v949 = vpop.f32.mrb[0].mxu0
    %950 = vdwg.mxu0
    %951 = vst [vmem:[#allocation11] sm:$0xff] %v943
    %952 = vst [vmem:[#allocation11 + $0x8] sm:$0xff] %v948
    // Predicated region
    $region58: #{tpu_custom_call.1} parent=1 // pred_check
      _
    $region59: #{tpu_custom_call.1} parent=1 // pred_check_branch
      %954 = sbr.rel (0) target = $region61
    $region60: #{tpu_custom_call.1} parent=1 // pred_region
      %s956 = ssub.s32 256, 256
      %957 = vsyncadd [#allocation4], %s956
      %s958 = sshll.u32 [#allocation11], 4
      %s959 = int_to_ptr.vmem [resolvable:$true] %s958
      %964 = dma.vmem_to_hbm [thread:$0]  %s959, 256, %s9, [#allocation4], 128, 128, 8
    $region61: #{tpu_custom_call.1} parent=1 // pred_fallthru
      _
    // Predicated region
    $region62: #{tpu_custom_call.1} parent=1 // pred_check
      _
    $region63: #{tpu_custom_call.1} parent=1 // pred_check_branch
      %966 = sbr.rel (0) target = $region65
    $region64: #{tpu_custom_call.1} parent=1 // pred_region
      %967 = dma.done [#allocation4], 256
    $region65: #{tpu_custom_call.1} parent=1 // pred_fallthru
      _
    %968 = vsyncpa [#allocation3], 1
    %969 = vsyncpa [#allocation6], 1
    %970 = vsyncpa [#allocation9], 1
    %971 = vsyncpa [#allocation4], 1

</llo_original>
